<compile_context>
chip_gen: v5e
topology: v5e:2x2
jax: 0.10.0
libtpu: 0.0.40
codegen_flags: <defaults>
</compile_context>

<pallas_src>
import functools

import numpy as np
import jax
import jax.numpy as jnp
from jax.experimental import pallas as pl
from jax.experimental.pallas import tpu as pltpu


# ----------------------------- MLP layout plan -----------------------------

def _mlp_layer_modes(n_mlp_layers):
    """Per-MLP-linear execution mode; must match between pack_params and the kernel.

    'mxu'     : (1,in)@(in,out) on the MXU (only used once, to fix orientation parity)
    'lane'    : weight stored (out,in); row vector -> column via VPU mul + lane reduce
    'sublane' : weight stored (in,out); column vector -> row via VPU mul + sublane reduce
    """
    n_linear = 1 + n_mlp_layers
    modes, orient = [], "row"
    for k in range(n_linear):
        if k == 0 and n_linear % 2 == 1:
            modes.append("mxu")                       # stays a row
        elif orient == "row":
            modes.append("lane"); orient = "col"
        else:
            modes.append("sublane"); orient = "row"
    assert orient == "row"                            # final result is a (1, mlp_dim) row
    return modes


# ----------------------------- fused kernel -----------------------------

def _gcn_global_norm_kernel(adj_ref, x_ref, projw_ref, gcnw_ref, hb_ref,
                            mlpw0_ref, mlpw_ref, mlpbrow_ref, mlpbcol_ref,
                            o_ref, *, n_gcn, n_mlp):
    """Entire GCNGlobalNorm forward in one kernel invocation (all operands in VMEM)."""
    norm_adj = adj_ref[...]                                     # pre-normalized (N, N)

    # --- projection + initial sum-pooling ---
    h = jnp.dot(x_ref[...], projw_ref[...],
                preferred_element_type=jnp.float32) + hb_ref[0:1, :]     # (N, H)
    hg = jnp.sum(h, axis=0, keepdims=True)                               # (1, H)

    # --- GCN layers (unrolled at trace time; n_gcn is tiny) ---
    for i in range(n_gcn):
        gw = gcnw_ref[2 * i]                                   # GraphConv W   (H, H), (in,out)
        lw = gcnw_ref[2 * i + 1]                               # graph-linear W (H, H), (in,out)
        gb = hb_ref[1 + 2 * i: 2 + 2 * i, :]                   # (1, H)
        lb = hb_ref[2 + 2 * i: 3 + 2 * i, :]                   # (1, H)

        # GraphConv, norm='both': relu(D_in^-1/2 A D_out^-1/2 h W + b)
        agg = jnp.dot(norm_adj, h, preferred_element_type=jnp.float32)
        conv = jnp.dot(agg, gw, preferred_element_type=jnp.float32) + gb
        conv = jnp.maximum(conv, 0.0)                          # gcn_activation = ReLU

        # residual + layer norm (no affine, eps=1e-5)
        y = h + conv
        mu = jnp.mean(y, axis=-1, keepdims=True)
        var = jnp.mean((y - mu) ** 2, axis=-1, keepdims=True)
        h = (y - mu) * jax.lax.rsqrt(var + 1e-5)

        # graph linear of the sum-pooled h; sum-pool and linear swapped so the MXU op
        # is (N,H)@(H,H):   (sum_n h) @ W + b == sum_n (h @ W) + b
        z = jnp.sum(jnp.dot(h, lw, preferred_element_type=jnp.float32),
                    axis=0, keepdims=True) + lb                # (1, H)
        hg = hg + jnp.where(z > 0, z, 0.01 * z)                # leaky_relu, slope 0.01

    # --- MLP chain: matvecs on the VPU (broadcast-multiply + reduce), alternating
    #     row/column orientation; weights were pre-oriented on the host. ---
    modes = _mlp_layer_modes(n_mlp)
    g = hg
    row_i = col_i = 0
    for k, mode in enumerate(modes):
        if k > 0:
            g = jnp.maximum(g, 0.0)                            # nn.ReLU between linears
        w = mlpw0_ref[...] if k == 0 else mlpw_ref[k - 1]
        if mode == "mxu":          # single parity-fixing MXU matvec: (1,in)@(in,out)
            g = (jnp.dot(g, w, preferred_element_type=jnp.float32)
                 + mlpbrow_ref[row_i:row_i + 1, :])
            row_i += 1
        elif mode == "lane":       # w stored (out,in); row -> column via lane reduce
            g = (jnp.sum(w * g, axis=1, keepdims=True)
                 + mlpbcol_ref[:, col_i:col_i + 1])
            col_i += 1
        else:                      # w stored (in,out); column -> row via sublane reduce
            g = (jnp.sum(w * g, axis=0, keepdims=True)
                 + mlpbrow_ref[row_i:row_i + 1, :])
            row_i += 1

    o_ref[...] = g                                             # (1, mlp_dim)


# ----------------------------- host-side helpers -----------------------------

def normalize_adj(adj):
    """Symmetric GraphConv normalization D_in^-1/2 A D_out^-1/2 (adj[dst, src]).

    Hoisted out of the kernel: pure recomputation when the graph is static.
    Zero degrees are clamped to 1 (demo graphs have self-loops, matching DGL).
    """
    d_in = jnp.maximum(jnp.sum(adj, axis=1, keepdims=True), 1.0)   # in-degree  (N, 1)
    d_out = jnp.maximum(jnp.sum(adj, axis=0, keepdims=True), 1.0)  # out-degree (1, N)
    return adj * jax.lax.rsqrt(d_in) * jax.lax.rsqrt(d_out)


def pack_params(params):
    """Pack per-layer params into a few slabs with the layouts the kernel expects."""
    n_mlp = len(params["mlp"]) - 1
    M = params["mlp"][0][0].shape[1]

    gcn_w, h_b = [], [params["proj_b"]]
    for (gw, gb, lw, lb) in params["gcn"]:
        gcn_w += [gw, lw]
        h_b += [gb, lb]
    gcn_w_slab = jnp.stack(gcn_w, axis=0)            # (2*n_gcn, H, H), all (in, out)
    h_b_slab = jnp.concatenate(h_b, axis=0)          # (1 + 2*n_gcn, H)

    modes = _mlp_layer_modes(n_mlp)
    w0, _ = params["mlp"][0]
    mlp_w0 = w0 if modes[0] == "mxu" else w0.T       # (H,M) for MXU, (M,H) for lane-reduce

    rest_w, row_b, col_b = [], [], []
    for k, (w, b) in enumerate(params["mlp"]):
        if modes[k] == "lane":
            col_b.append(b.reshape(-1, 1))           # bias consumed as a column
            if k > 0:
                rest_w.append(w.T)                   # stored (out, in)
        else:
            row_b.append(b.reshape(1, -1))           # bias consumed as a row
            if k > 0:
                rest_w.append(w)                     # stored (in, out)

    mlp_w_slab = (jnp.stack(rest_w, axis=0) if rest_w
                  else jnp.zeros((1, M, M), jnp.float32))
    mlp_b_row = jnp.concatenate(row_b, axis=0)       # (n_row, M), n_row >= 1
    mlp_b_col = (jnp.concatenate(col_b, axis=1) if col_b
                 else jnp.zeros((M, 1), jnp.float32))

    return dict(proj_w=params["proj_w"], gcn_w=gcn_w_slab, h_b=h_b_slab,
                mlp_w0=mlp_w0, mlp_w=mlp_w_slab,
                mlp_b_row=mlp_b_row, mlp_b_col=mlp_b_col)


def gcn_global_norm_forward(packed, norm_adj, node_features, *, n_gcn, n_mlp):
    """One gridless pallas_call for the whole forward (everything resident in VMEM)."""
    mlp_d = packed["mlp_b_row"].shape[1]
    inputs = [norm_adj, node_features, packed["proj_w"], packed["gcn_w"],
              packed["h_b"], packed["mlp_w0"], packed["mlp_w"],
              packed["mlp_b_row"], packed["mlp_b_col"]]

    N, in_f = node_features.shape
    H = packed["proj_w"].shape[1]
    flops = 2 * (N * in_f * H
                 + n_gcn * (N * N * H + 2 * N * H * H)
                 + H * mlp_d + n_mlp * mlp_d * mlp_d)
    bytes_accessed = 4 * (sum(int(a.size) for a in inputs) + mlp_d)
    transcendentals = n_gcn * N                      # layer-norm rsqrt per node

    vmem = pl.BlockSpec(memory_space=pltpu.MemorySpace.VMEM)
    kernel = functools.partial(_gcn_global_norm_kernel, n_gcn=n_gcn, n_mlp=n_mlp)

    return pl.pallas_call(
        kernel,
        out_shape=jax.ShapeDtypeStruct((1, mlp_d), jnp.float32),
        in_specs=[vmem] * len(inputs),
        out_specs=vmem,
        compiler_params=pltpu.CompilerParams(vmem_limit_bytes=32 * 1024 * 1024),
        cost_estimate=pl.CostEstimate(flops=flops,
                                      transcendentals=transcendentals,
                                      bytes_accessed=bytes_accessed),
    )(*inputs)


# ----------------------------- parameters & reference -----------------------------

def init_params(key, in_feats, h_feats, mlp_dim, n_gcn_layers, n_mlp_layers):
    """All linear weights stored pre-transposed as (in, out); biases as (1, out).
    (A PyTorch nn.Linear checkpoint stores (out, in) and must be transposed.)"""
    def nrm(k, shape, scale=0.1):
        return scale * jax.random.normal(k, shape, jnp.float32)

    keys = iter(jax.random.split(key, 4 + 4 * n_gcn_layers + 2 * (n_mlp_layers + 1) + 4))
    params = {
        "proj_w": nrm(next(keys), (in_feats, h_feats)),
        "proj_b": nrm(next(keys), (1, h_feats)),
        "gcn": [],
        "mlp": [],
    }
    for _ in range(n_gcn_layers):
        params["gcn"].append((
            nrm(next(keys), (h_feats, h_feats)),     # GraphConv weight
            nrm(next(keys), (1, h_feats)),           # GraphConv bias
            nrm(next(keys), (h_feats, h_feats)),     # graph_layers Linear weight
            nrm(next(keys), (1, h_feats)),           # graph_layers Linear bias
        ))
    params["mlp"].append((nrm(next(keys), (h_feats, mlp_dim)),
                          nrm(next(keys), (1, mlp_dim))))
    for _ in range(n_mlp_layers):
        params["mlp"].append((nrm(next(keys), (mlp_dim, mlp_dim)),
                              nrm(next(keys), (1, mlp_dim))))
    return params


def reference_forward(params, adj, x):
    """Pure-JAX reference of the PyTorch module (for correctness checking)."""
    norm_adj = normalize_adj(adj)
    h = x @ params["proj_w"] + params["proj_b"]
    hg = jnp.sum(h, axis=0, keepdims=True)
    for (gw, gb, lw, lb) in params["gcn"]:
        conv = jnp.maximum(norm_adj @ h @ gw + gb, 0.0)
        y = h + conv
        mu = jnp.mean(y, axis=-1, keepdims=True)
        var = jnp.mean((y - mu) ** 2, axis=-1, keepdims=True)
        h = (y - mu) / jnp.sqrt(var + 1e-5)
        z = jnp.sum(h, axis=0, keepdims=True) @ lw + lb
        hg = hg + jnp.where(z > 0, z, 0.01 * z)
    w0, b0 = params["mlp"][0]
    g = hg @ w0 + b0
    for (w, b) in params["mlp"][1:]:
        g = jnp.maximum(g, 0.0) @ w + b
    return g


# ----------------------------- main -----------------------------

if __name__ == "__main__":
    key = jax.random.PRNGKey(0)
    k_param, k_feat, k_adj = jax.random.split(key, 3)

    in_feats, h_feats, mlp_dim = 16, 32, 32
    n_gcn_layers, n_mlp_layers = 2, 2
    N = 16  # nodes in the single graph

    params = init_params(k_param, in_feats, h_feats, mlp_dim, n_gcn_layers, n_mlp_layers)
    node_features = jax.random.normal(k_feat, (N, in_feats), jnp.float32)
    adj = (jax.random.uniform(k_adj, (N, N)) < 0.3).astype(jnp.float32)
    adj = jnp.maximum(adj, jnp.eye(N, dtype=jnp.float32))  # self-loops (nonzero in-degree)

    packed = pack_params(params)
    norm_adj = normalize_adj(adj)

    fwd = jax.jit(functools.partial(gcn_global_norm_forward,
                                    n_gcn=n_gcn_layers, n_mlp=n_mlp_layers))
    out = fwd(packed, norm_adj, node_features)
    jax.block_until_ready(out)

    assert out.shape == (1, mlp_dim) and out.dtype == jnp.float32
    ref = reference_forward(params, adj, node_features)
    np.testing.assert_allclose(np.asarray(out), np.asarray(ref), rtol=1e-3, atol=1e-4)
    print("KERNEL_OK")
</pallas_src>

<mosaic_0001>
module attributes {stable_mosaic.version = 11 : i64} {
  func.func @_gcn_global_norm_kernel(%arg0: memref<16x16xf32, #tpu.memory_space<vmem>>, %arg1: memref<16x16xf32, #tpu.memory_space<vmem>>, %arg2: memref<16x32xf32, #tpu.memory_space<vmem>>, %arg3: memref<4x32x32xf32, #tpu.memory_space<vmem>>, %arg4: memref<5x32xf32, #tpu.memory_space<vmem>>, %arg5: memref<32x32xf32, #tpu.memory_space<vmem>>, %arg6: memref<2x32x32xf32, #tpu.memory_space<vmem>>, %arg7: memref<2x32xf32, #tpu.memory_space<vmem>>, %arg8: memref<32x1xf32, #tpu.memory_space<vmem>>, %arg9: memref<1x32xf32, #tpu.memory_space<vmem>>) attributes {dimension_semantics = [], scalar_prefetch = 0 : i64, scratch_operands = 0 : i64, tpu.core_type = #tpu.core_type<tc>} {
    %c0 = arith.constant 0 : index
    %c0_0 = arith.constant 0 : index
    %0 = vector.load %arg0[%c0, %c0_0] : memref<16x16xf32, #tpu.memory_space<vmem>>, vector<16x16xf32>
    %c0_1 = arith.constant 0 : index
    %c0_2 = arith.constant 0 : index
    %1 = vector.load %arg1[%c0_1, %c0_2] : memref<16x16xf32, #tpu.memory_space<vmem>>, vector<16x16xf32>
    %c0_3 = arith.constant 0 : index
    %c0_4 = arith.constant 0 : index
    %2 = vector.load %arg2[%c0_3, %c0_4] : memref<16x32xf32, #tpu.memory_space<vmem>>, vector<16x32xf32>
    %cst = arith.constant dense<0.000000e+00> : vector<16x32xf32>
    %3 = tpu.matmul %1, %2, %cst {dimension_numbers = #tpu.dot_dimension_numbers<[1], [0], [0], [1], [0, 0, 1, 1], [], []>} : vector<16x16xf32>, vector<16x32xf32>, vector<16x32xf32> -> vector<16x32xf32>
    %c0_5 = arith.constant 0 : index
    %c0_6 = arith.constant 0 : index
    %4 = vector.load %arg4[%c0_5, %c0_6] : memref<5x32xf32, #tpu.memory_space<vmem>>, vector<1x32xf32>
    %5 = vector.broadcast %4 : vector<1x32xf32> to vector<16x32xf32>
    %6 = arith.addf %3, %5 : vector<16x32xf32>
    %cst_7 = arith.constant dense<0.000000e+00> : vector<32xf32>
    %7 = vector.multi_reduction <add>, %6, %cst_7 [0] : vector<16x32xf32> to vector<32xf32>
    %8 = vector.shape_cast %7 : vector<32xf32> to vector<1x32xf32>
    %c0_8 = arith.constant 0 : index
    %c0_9 = arith.constant 0 : index
    %c0_10 = arith.constant 0 : index
    %9 = vector.load %arg3[%c0_8, %c0_9, %c0_10] : memref<4x32x32xf32, #tpu.memory_space<vmem>>, vector<1x32x32xf32>
    %10 = vector.shape_cast %9 : vector<1x32x32xf32> to vector<32x32xf32>
    %c1 = arith.constant 1 : index
    %c0_11 = arith.constant 0 : index
    %c0_12 = arith.constant 0 : index
    %11 = vector.load %arg3[%c1, %c0_11, %c0_12] : memref<4x32x32xf32, #tpu.memory_space<vmem>>, vector<1x32x32xf32>
    %12 = vector.shape_cast %11 : vector<1x32x32xf32> to vector<32x32xf32>
    %c1_13 = arith.constant 1 : index
    %c0_14 = arith.constant 0 : index
    %13 = vector.load %arg4[%c1_13, %c0_14] : memref<5x32xf32, #tpu.memory_space<vmem>>, vector<1x32xf32>
    %c2 = arith.constant 2 : index
    %c0_15 = arith.constant 0 : index
    %14 = vector.load %arg4[%c2, %c0_15] : memref<5x32xf32, #tpu.memory_space<vmem>>, vector<1x32xf32>
    %cst_16 = arith.constant dense<0.000000e+00> : vector<16x32xf32>
    %15 = tpu.matmul %0, %6, %cst_16 {dimension_numbers = #tpu.dot_dimension_numbers<[1], [0], [0], [1], [0, 0, 1, 1], [], []>} : vector<16x16xf32>, vector<16x32xf32>, vector<16x32xf32> -> vector<16x32xf32>
    %cst_17 = arith.constant dense<0.000000e+00> : vector<16x32xf32>
    %16 = tpu.matmul %15, %10, %cst_17 {dimension_numbers = #tpu.dot_dimension_numbers<[1], [0], [0], [1], [0, 0, 1, 1], [], []>} : vector<16x32xf32>, vector<32x32xf32>, vector<16x32xf32> -> vector<16x32xf32>
    %17 = vector.broadcast %13 : vector<1x32xf32> to vector<16x32xf32>
    %18 = arith.addf %16, %17 : vector<16x32xf32>
    %cst_18 = arith.constant 0.000000e+00 : f32
    %19 = vector.broadcast %cst_18 : f32 to vector<16x32xf32>
    %20 = arith.maximumf %18, %19 : vector<16x32xf32>
    %21 = arith.addf %6, %20 : vector<16x32xf32>
    %cst_19 = arith.constant dense<0.000000e+00> : vector<16xf32>
    %22 = vector.multi_reduction <add>, %21, %cst_19 [1] : vector<16x32xf32> to vector<16xf32>
    %23 = vector.shape_cast %22 : vector<16xf32> to vector<16x1xf32>
    %cst_20 = arith.constant 3.200000e+01 : f32
    %24 = vector.broadcast %cst_20 : f32 to vector<16x1xf32>
    %25 = arith.divf %23, %24 : vector<16x1xf32>
    %26 = vector.broadcast %25 : vector<16x1xf32> to vector<16x32xf32>
    %27 = arith.subf %21, %26 : vector<16x32xf32>
    %28 = arith.mulf %27, %27 : vector<16x32xf32>
    %cst_21 = arith.constant dense<0.000000e+00> : vector<16xf32>
    %29 = vector.multi_reduction <add>, %28, %cst_21 [1] : vector<16x32xf32> to vector<16xf32>
    %30 = vector.shape_cast %29 : vector<16xf32> to vector<16x1xf32>
    %cst_22 = arith.constant 3.200000e+01 : f32
    %31 = vector.broadcast %cst_22 : f32 to vector<16x1xf32>
    %32 = arith.divf %30, %31 : vector<16x1xf32>
    %33 = vector.broadcast %25 : vector<16x1xf32> to vector<16x32xf32>
    %34 = arith.subf %21, %33 : vector<16x32xf32>
    %cst_23 = arith.constant 9.99999974E-6 : f32
    %35 = vector.broadcast %cst_23 : f32 to vector<16x1xf32>
    %36 = arith.addf %32, %35 : vector<16x1xf32>
    %37 = math.rsqrt %36 : vector<16x1xf32>
    %38 = vector.broadcast %37 : vector<16x1xf32> to vector<16x32xf32>
    %39 = arith.mulf %34, %38 : vector<16x32xf32>
    %cst_24 = arith.constant dense<0.000000e+00> : vector<16x32xf32>
    %40 = tpu.matmul %39, %12, %cst_24 {dimension_numbers = #tpu.dot_dimension_numbers<[1], [0], [0], [1], [0, 0, 1, 1], [], []>} : vector<16x32xf32>, vector<32x32xf32>, vector<16x32xf32> -> vector<16x32xf32>
    %cst_25 = arith.constant dense<0.000000e+00> : vector<32xf32>
    %41 = vector.multi_reduction <add>, %40, %cst_25 [0] : vector<16x32xf32> to vector<32xf32>
    %42 = vector.shape_cast %41 : vector<32xf32> to vector<1x32xf32>
    %43 = arith.addf %42, %14 : vector<1x32xf32>
    %cst_26 = arith.constant 0.000000e+00 : f32
    %44 = vector.broadcast %cst_26 : f32 to vector<1x32xf32>
    %45 = arith.cmpf ogt, %43, %44 : vector<1x32xf32>
    %cst_27 = arith.constant 0.00999999977 : f32
    %46 = vector.broadcast %cst_27 : f32 to vector<1x32xf32>
    %47 = arith.mulf %46, %43 : vector<1x32xf32>
    %48 = arith.select %45, %43, %47 : vector<1x32xi1>, vector<1x32xf32>
    %49 = arith.addf %8, %48 : vector<1x32xf32>
    %c2_28 = arith.constant 2 : index
    %c0_29 = arith.constant 0 : index
    %c0_30 = arith.constant 0 : index
    %50 = vector.load %arg3[%c2_28, %c0_29, %c0_30] : memref<4x32x32xf32, #tpu.memory_space<vmem>>, vector<1x32x32xf32>
    %51 = vector.shape_cast %50 : vector<1x32x32xf32> to vector<32x32xf32>
    %c3 = arith.constant 3 : index
    %c0_31 = arith.constant 0 : index
    %c0_32 = arith.constant 0 : index
    %52 = vector.load %arg3[%c3, %c0_31, %c0_32] : memref<4x32x32xf32, #tpu.memory_space<vmem>>, vector<1x32x32xf32>
    %53 = vector.shape_cast %52 : vector<1x32x32xf32> to vector<32x32xf32>
    %c3_33 = arith.constant 3 : index
    %c0_34 = arith.constant 0 : index
    %54 = vector.load %arg4[%c3_33, %c0_34] : memref<5x32xf32, #tpu.memory_space<vmem>>, vector<1x32xf32>
    %c4 = arith.constant 4 : index
    %c0_35 = arith.constant 0 : index
    %55 = vector.load %arg4[%c4, %c0_35] : memref<5x32xf32, #tpu.memory_space<vmem>>, vector<1x32xf32>
    %cst_36 = arith.constant dense<0.000000e+00> : vector<16x32xf32>
    %56 = tpu.matmul %0, %39, %cst_36 {dimension_numbers = #tpu.dot_dimension_numbers<[1], [0], [0], [1], [0, 0, 1, 1], [], []>} : vector<16x16xf32>, vector<16x32xf32>, vector<16x32xf32> -> vector<16x32xf32>
    %cst_37 = arith.constant dense<0.000000e+00> : vector<16x32xf32>
    %57 = tpu.matmul %56, %51, %cst_37 {dimension_numbers = #tpu.dot_dimension_numbers<[1], [0], [0], [1], [0, 0, 1, 1], [], []>} : vector<16x32xf32>, vector<32x32xf32>, vector<16x32xf32> -> vector<16x32xf32>
    %58 = vector.broadcast %54 : vector<1x32xf32> to vector<16x32xf32>
    %59 = arith.addf %57, %58 : vector<16x32xf32>
    %cst_38 = arith.constant 0.000000e+00 : f32
    %60 = vector.broadcast %cst_38 : f32 to vector<16x32xf32>
    %61 = arith.maximumf %59, %60 : vector<16x32xf32>
    %62 = arith.addf %39, %61 : vector<16x32xf32>
    %cst_39 = arith.constant dense<0.000000e+00> : vector<16xf32>
    %63 = vector.multi_reduction <add>, %62, %cst_39 [1] : vector<16x32xf32> to vector<16xf32>
    %64 = vector.shape_cast %63 : vector<16xf32> to vector<16x1xf32>
    %cst_40 = arith.constant 3.200000e+01 : f32
    %65 = vector.broadcast %cst_40 : f32 to vector<16x1xf32>
    %66 = arith.divf %64, %65 : vector<16x1xf32>
    %67 = vector.broadcast %66 : vector<16x1xf32> to vector<16x32xf32>
    %68 = arith.subf %62, %67 : vector<16x32xf32>
    %69 = arith.mulf %68, %68 : vector<16x32xf32>
    %cst_41 = arith.constant dense<0.000000e+00> : vector<16xf32>
    %70 = vector.multi_reduction <add>, %69, %cst_41 [1] : vector<16x32xf32> to vector<16xf32>
    %71 = vector.shape_cast %70 : vector<16xf32> to vector<16x1xf32>
    %cst_42 = arith.constant 3.200000e+01 : f32
    %72 = vector.broadcast %cst_42 : f32 to vector<16x1xf32>
    %73 = arith.divf %71, %72 : vector<16x1xf32>
    %74 = vector.broadcast %66 : vector<16x1xf32> to vector<16x32xf32>
    %75 = arith.subf %62, %74 : vector<16x32xf32>
    %cst_43 = arith.constant 9.99999974E-6 : f32
    %76 = vector.broadcast %cst_43 : f32 to vector<16x1xf32>
    %77 = arith.addf %73, %76 : vector<16x1xf32>
    %78 = math.rsqrt %77 : vector<16x1xf32>
    %79 = vector.broadcast %78 : vector<16x1xf32> to vector<16x32xf32>
    %80 = arith.mulf %75, %79 : vector<16x32xf32>
    %cst_44 = arith.constant dense<0.000000e+00> : vector<16x32xf32>
    %81 = tpu.matmul %80, %53, %cst_44 {dimension_numbers = #tpu.dot_dimension_numbers<[1], [0], [0], [1], [0, 0, 1, 1], [], []>} : vector<16x32xf32>, vector<32x32xf32>, vector<16x32xf32> -> vector<16x32xf32>
    %cst_45 = arith.constant dense<0.000000e+00> : vector<32xf32>
    %82 = vector.multi_reduction <add>, %81, %cst_45 [0] : vector<16x32xf32> to vector<32xf32>
    %83 = vector.shape_cast %82 : vector<32xf32> to vector<1x32xf32>
    %84 = arith.addf %83, %55 : vector<1x32xf32>
    %cst_46 = arith.constant 0.000000e+00 : f32
    %85 = vector.broadcast %cst_46 : f32 to vector<1x32xf32>
    %86 = arith.cmpf ogt, %84, %85 : vector<1x32xf32>
    %cst_47 = arith.constant 0.00999999977 : f32
    %87 = vector.broadcast %cst_47 : f32 to vector<1x32xf32>
    %88 = arith.mulf %87, %84 : vector<1x32xf32>
    %89 = arith.select %86, %84, %88 : vector<1x32xi1>, vector<1x32xf32>
    %90 = arith.addf %49, %89 : vector<1x32xf32>
    %c0_48 = arith.constant 0 : index
    %c0_49 = arith.constant 0 : index
    %91 = vector.load %arg5[%c0_48, %c0_49] : memref<32x32xf32, #tpu.memory_space<vmem>>, vector<32x32xf32>
    %cst_50 = arith.constant dense<0.000000e+00> : vector<1x32xf32>
    %92 = tpu.matmul %90, %91, %cst_50 {dimension_numbers = #tpu.dot_dimension_numbers<[1], [0], [0], [1], [0, 0, 1, 1], [], []>} : vector<1x32xf32>, vector<32x32xf32>, vector<1x32xf32> -> vector<1x32xf32>
    %c0_51 = arith.constant 0 : index
    %c0_52 = arith.constant 0 : index
    %93 = vector.load %arg7[%c0_51, %c0_52] : memref<2x32xf32, #tpu.memory_space<vmem>>, vector<1x32xf32>
    %94 = arith.addf %92, %93 : vector<1x32xf32>
    %cst_53 = arith.constant 0.000000e+00 : f32
    %95 = vector.broadcast %cst_53 : f32 to vector<1x32xf32>
    %96 = arith.maximumf %94, %95 : vector<1x32xf32>
    %c0_54 = arith.constant 0 : index
    %c0_55 = arith.constant 0 : index
    %c0_56 = arith.constant 0 : index
    %97 = vector.load %arg6[%c0_54, %c0_55, %c0_56] : memref<2x32x32xf32, #tpu.memory_space<vmem>>, vector<1x32x32xf32>
    %98 = vector.shape_cast %97 : vector<1x32x32xf32> to vector<32x32xf32>
    %99 = vector.broadcast %96 : vector<1x32xf32> to vector<32x32xf32>
    %100 = arith.mulf %98, %99 : vector<32x32xf32>
    %cst_57 = arith.constant dense<0.000000e+00> : vector<32xf32>
    %101 = vector.multi_reduction <add>, %100, %cst_57 [1] : vector<32x32xf32> to vector<32xf32>
    %102 = vector.shape_cast %101 : vector<32xf32> to vector<32x1xf32>
    %c0_58 = arith.constant 0 : index
    %c0_59 = arith.constant 0 : index
    %103 = vector.load %arg8[%c0_58, %c0_59] : memref<32x1xf32, #tpu.memory_space<vmem>>, vector<32x1xf32>
    %104 = arith.addf %102, %103 : vector<32x1xf32>
    %cst_60 = arith.constant 0.000000e+00 : f32
    %105 = vector.broadcast %cst_60 : f32 to vector<32x1xf32>
    %106 = arith.maximumf %104, %105 : vector<32x1xf32>
    %c1_61 = arith.constant 1 : index
    %c0_62 = arith.constant 0 : index
    %c0_63 = arith.constant 0 : index
    %107 = vector.load %arg6[%c1_61, %c0_62, %c0_63] : memref<2x32x32xf32, #tpu.memory_space<vmem>>, vector<1x32x32xf32>
    %108 = vector.shape_cast %107 : vector<1x32x32xf32> to vector<32x32xf32>
    %109 = vector.broadcast %106 : vector<32x1xf32> to vector<32x32xf32>
    %110 = arith.mulf %108, %109 : vector<32x32xf32>
    %cst_64 = arith.constant dense<0.000000e+00> : vector<32xf32>
    %111 = vector.multi_reduction <add>, %110, %cst_64 [0] : vector<32x32xf32> to vector<32xf32>
    %112 = vector.shape_cast %111 : vector<32xf32> to vector<1x32xf32>
    %c1_65 = arith.constant 1 : index
    %c0_66 = arith.constant 0 : index
    %113 = vector.load %arg7[%c1_65, %c0_66] : memref<2x32xf32, #tpu.memory_space<vmem>>, vector<1x32xf32>
    %114 = arith.addf %112, %113 : vector<1x32xf32>
    %c0_67 = arith.constant 0 : index
    %c0_68 = arith.constant 0 : index
    %115 = vector.load %arg9[%c0_67, %c0_68] : memref<1x32xf32, #tpu.memory_space<vmem>>, vector<1x32xf32>
    tpu.vector_store %arg9[%c0_67, %c0_68], %114 {strides = array<i32>} : memref<1x32xf32, #tpu.memory_space<vmem>>, vector<1x32xf32>,
    return
  }
}

</mosaic_0001>

<llo_original>
// kernel: gcn_global_norm_forward.1
$region0: #{gcn_global_norm_forward.1}
  #allocation0 [shape = 'u32[]', space=smem, size = 0x4, offset = 0x4, fixed_abs, tag = 'smem constant byte address 0x4 - core index']
  #allocation1 [shape = 'u32[72,128]{1,0:T(1,128)}', space=vmem, size = 0x9000, scoped, tag = 'internal scratch']
  %s0 = inlined_call_operand.hbm [shape: f32[16,16], index: 0, kind: input, shape index: {}]
  %s1 = inlined_call_operand.hbm [shape: f32[16,16], index: 1, kind: input, shape index: {}]
  %s2 = inlined_call_operand.hbm [shape: f32[16,32], index: 2, kind: input, shape index: {}]
  %s3 = inlined_call_operand.hbm [shape: f32[4,32,32], index: 3, kind: input, shape index: {}]
  %s4 = inlined_call_operand.hbm [shape: f32[5,32], index: 4, kind: input, shape index: {}]
  %s5 = inlined_call_operand.vmem [shape: f32[32,32], index: 5, kind: input, shape index: {}]
  %s6 = inlined_call_operand.hbm [shape: f32[2,32,32], index: 6, kind: input, shape index: {}]
  %s7 = inlined_call_operand.vmem [shape: f32[2,32], index: 7, kind: input, shape index: {}]
  %s8 = inlined_call_operand.vmem [shape: f32[32,1], index: 8, kind: input, shape index: {}]
  %s9 = inlined_call_operand.hbm [shape: f32[1,32], index: 9, kind: output, shape index: {}]
  %s10 = sld [smem:[#allocation0]]
  $region70: #{gcn_global_norm_forward.1} parent=0
    _
  %s12 = ssub.s32 1, %s10
  %s13 = scalar_select 0, %s12, %s10
  $region1: #{gcn_global_norm_forward.1} parent=0
    #allocation2 [shape = 'u8[8192]{0}', space=vmem, size = 0x2000, scoped, tag = 'input window, operand 0, single buffered']
    #allocation3 [shape = 's32[1]{0}', space=sflag, size = 0x4, scoped, tag = 'scoped memory for gcn_global_norm_forward.1']
    #allocation4 [shape = 's32[1]{0}', space=sflag, size = 0x4, scoped, tag = 'scoped memory for gcn_global_norm_forward.1']
    #allocation5 [shape = 'u8[8192]{0}', space=vmem, size = 0x2000, scoped, tag = 'input window, operand 1, single buffered']
    #allocation6 [shape = 's32[1]{0}', space=sflag, size = 0x4, scoped, tag = 'scoped memory for gcn_global_norm_forward.1']
    #allocation7 [shape = 'u8[8192]{0}', space=vmem, size = 0x2000, scoped, tag = 'input window, operand 2, single buffered']
    #allocation8 [shape = 'u8[65536]{0}', space=vmem, size = 0x10000, scoped, tag = 'input window, operand 3, single buffered']
    #allocation9 [shape = 's32[1]{0}', space=sflag, size = 0x4, scoped, tag = 'scoped memory for gcn_global_norm_forward.1']
    #allocation10 [shape = 'u8[4096]{0}', space=vmem, size = 0x1000, scoped, tag = 'input window, operand 4, single buffered']
    #allocation11 [shape = 'u8[32768]{0}', space=vmem, size = 0x8000, scoped, tag = 'input window, operand 6, single buffered']
    #allocation12 [shape = 's32[1]{0}', space=sflag, size = 0x4, scoped, tag = 'scoped memory for gcn_global_norm_forward.1']
    #allocation13 [shape = 'u8[512]{0}', space=vmem, size = 0x400, scoped, tag = 'output window, operand 0, single buffered']
    %14 = vsyncpa [#allocation3], 0
    %15 = vsyncpa [#allocation6], 0
    %16 = vsyncpa [#allocation9], 0
    %17 = vsyncpa [#allocation12], 0
    %18 = vsyncpa [#allocation4], 0
    // Predicated region
    $region2: #{gcn_global_norm_forward.1} parent=1 // pred_check
      _
    $region3: #{gcn_global_norm_forward.1} parent=1 // pred_check_branch
      %20 = sbr.rel (0) target = $region5
    $region4: #{gcn_global_norm_forward.1} parent=1 // pred_region
      %22 = vsyncadd [#allocation3], 0
      %s23 = sshll.u32 %s0, 4
      %s24 = int_to_ptr.hbm [resolvable:$true] %s23
      %s25 = sshll.u32 [#allocation2], 4
      %s26 = int_to_ptr.vmem [resolvable:$true] %s25
      %31 = dma.hbm_to_vmem [thread:$0]  %s24, 256, %s26, [#allocation3], 128, 128, 8
    $region5: #{gcn_global_norm_forward.1} parent=1 // pred_fallthru
      _
    // Predicated region
    $region6: #{gcn_global_norm_forward.1} parent=1 // pred_check
      _
    $region7: #{gcn_global_norm_forward.1} parent=1 // pred_check_branch
      %33 = sbr.rel (0) target = $region9
    $region8: #{gcn_global_norm_forward.1} parent=1 // pred_region
      %35 = vsyncadd [#allocation6], 0
      %s36 = sshll.u32 %s1, 4
      %s37 = int_to_ptr.hbm [resolvable:$true] %s36
      %s38 = sshll.u32 [#allocation5], 4
      %s39 = int_to_ptr.vmem [resolvable:$true] %s38
      %44 = dma.hbm_to_vmem [thread:$0]  %s37, 256, %s39, [#allocation6], 128, 128, 8
    $region9: #{gcn_global_norm_forward.1} parent=1 // pred_fallthru
      _
    // Predicated region
    $region10: #{gcn_global_norm_forward.1} parent=1 // pred_check
      _
    $region11: #{gcn_global_norm_forward.1} parent=1 // pred_check_branch
      %46 = sbr.rel (0) target = $region13
    $region12: #{gcn_global_norm_forward.1} parent=1 // pred_region
      %48 = vsyncadd [#allocation6], 0
      %s49 = sshll.u32 %s2, 4
      %s50 = int_to_ptr.hbm [resolvable:$true] %s49
      %s51 = sshll.u32 [#allocation7], 4
      %s52 = int_to_ptr.vmem [resolvable:$true] %s51
      %57 = dma.hbm_to_vmem [thread:$0]  %s50, 256, %s52, [#allocation6], 128, 128, 8
    $region13: #{gcn_global_norm_forward.1} parent=1 // pred_fallthru
      _
    // Predicated region
    $region14: #{gcn_global_norm_forward.1} parent=1 // pred_check
      _
    $region15: #{gcn_global_norm_forward.1} parent=1 // pred_check_branch
      %59 = sbr.rel (0) target = $region17
    $region16: #{gcn_global_norm_forward.1} parent=1 // pred_region
      %61 = vsyncadd [#allocation9], 0
      %s62 = sshll.u32 %s3, 4
      %s63 = int_to_ptr.hbm [resolvable:$true] %s62
      %s64 = sshll.u32 [#allocation8], 4
      %s65 = int_to_ptr.vmem [resolvable:$true] %s64
      %70 = dma.hbm_to_vmem [thread:$0]  %s63, 2048, %s65, [#allocation9], 128, 128, 8
    $region17: #{gcn_global_norm_forward.1} parent=1 // pred_fallthru
      _
    // Predicated region
    $region18: #{gcn_global_norm_forward.1} parent=1 // pred_check
      _
    $region19: #{gcn_global_norm_forward.1} parent=1 // pred_check_branch
      %72 = sbr.rel (0) target = $region21
    $region20: #{gcn_global_norm_forward.1} parent=1 // pred_region
      %74 = vsyncadd [#allocation9], 0
      %s76 = sshll.u32 %s4, 4
      %s77 = int_to_ptr.hbm [resolvable:$true] %s76
      %s78 = sshll.u32 [#allocation10], 4
      %s79 = int_to_ptr.vmem [resolvable:$true] %s78
      %81 = dma.hbm_to_vmem [thread:$0]  %s77, 128, %s79, [#allocation9]
    $region21: #{gcn_global_norm_forward.1} parent=1 // pred_fallthru
      _
    // Predicated region
    $region22: #{gcn_global_norm_forward.1} parent=1 // pred_check
      _
    $region23: #{gcn_global_norm_forward.1} parent=1 // pred_check_branch
      %83 = sbr.rel (0) target = $region25
    $region24: #{gcn_global_norm_forward.1} parent=1 // pred_region
      _
    $region25: #{gcn_global_norm_forward.1} parent=1 // pred_fallthru
      _
    // Predicated region
    $region26: #{gcn_global_norm_forward.1} parent=1 // pred_check
      _
    $region27: #{gcn_global_norm_forward.1} parent=1 // pred_check_branch
      %85 = sbr.rel (0) target = $region29
    $region28: #{gcn_global_norm_forward.1} parent=1 // pred_region
      %87 = vsyncadd [#allocation12], 0
      %s88 = sshll.u32 %s6, 4
      %s89 = int_to_ptr.hbm [resolvable:$true] %s88
      %s90 = sshll.u32 [#allocation11], 4
      %s91 = int_to_ptr.vmem [resolvable:$true] %s90
      %96 = dma.hbm_to_vmem [thread:$0]  %s89, 1024, %s91, [#allocation12], 128, 128, 8
    $region29: #{gcn_global_norm_forward.1} parent=1 // pred_fallthru
      _
    // Predicated region
    $region30: #{gcn_global_norm_forward.1} parent=1 // pred_check
      _
    $region31: #{gcn_global_norm_forward.1} parent=1 // pred_check_branch
      %98 = sbr.rel (0) target = $region33
    $region32: #{gcn_global_norm_forward.1} parent=1 // pred_region
      _
    $region33: #{gcn_global_norm_forward.1} parent=1 // pred_fallthru
      _
    // Predicated region
    $region34: #{gcn_global_norm_forward.1} parent=1 // pred_check
      _
    $region35: #{gcn_global_norm_forward.1} parent=1 // pred_check_branch
      %100 = sbr.rel (0) target = $region37
    $region36: #{gcn_global_norm_forward.1} parent=1 // pred_region
      _
    $region37: #{gcn_global_norm_forward.1} parent=1 // pred_fallthru
      _
    // Predicated region
    $region38: #{gcn_global_norm_forward.1} parent=1 // pred_check
      _
    $region39: #{gcn_global_norm_forward.1} parent=1 // pred_check_branch
      %102 = sbr.rel (0) target = $region41
    $region40: #{gcn_global_norm_forward.1} parent=1 // pred_region
      %104 = dma.done [#allocation3], 256
    $region41: #{gcn_global_norm_forward.1} parent=1 // pred_fallthru
      _
    // Predicated region
    $region42: #{gcn_global_norm_forward.1} parent=1 // pred_check
      _
    $region43: #{gcn_global_norm_forward.1} parent=1 // pred_check_branch
      %106 = sbr.rel (0) target = $region45
    $region44: #{gcn_global_norm_forward.1} parent=1 // pred_region
      %108 = dma.done [#allocation6], 256
    $region45: #{gcn_global_norm_forward.1} parent=1 // pred_fallthru
      _
    // Predicated region
    $region46: #{gcn_global_norm_forward.1} parent=1 // pred_check
      _
    $region47: #{gcn_global_norm_forward.1} parent=1 // pred_check_branch
      %110 = sbr.rel (0) target = $region49
    $region48: #{gcn_global_norm_forward.1} parent=1 // pred_region
      %112 = dma.done [#allocation6], 256
    $region49: #{gcn_global_norm_forward.1} parent=1 // pred_fallthru
      _
    // Predicated region
    $region50: #{gcn_global_norm_forward.1} parent=1 // pred_check
      _
    $region51: #{gcn_global_norm_forward.1} parent=1 // pred_check_branch
      %114 = sbr.rel (0) target = $region53
    $region52: #{gcn_global_norm_forward.1} parent=1 // pred_region
      %116 = dma.done [#allocation9], 2048
    $region53: #{gcn_global_norm_forward.1} parent=1 // pred_fallthru
      _
    // Predicated region
    $region54: #{gcn_global_norm_forward.1} parent=1 // pred_check
      _
    $region55: #{gcn_global_norm_forward.1} parent=1 // pred_check_branch
      %118 = sbr.rel (0) target = $region57
    $region56: #{gcn_global_norm_forward.1} parent=1 // pred_region
      %120 = dma.done [#allocation9], 128
    $region57: #{gcn_global_norm_forward.1} parent=1 // pred_fallthru
      _
    // Predicated region
    $region58: #{gcn_global_norm_forward.1} parent=1 // pred_check
      _
    $region59: #{gcn_global_norm_forward.1} parent=1 // pred_check_branch
      %122 = sbr.rel (0) target = $region61
    $region60: #{gcn_global_norm_forward.1} parent=1 // pred_region
      %124 = dma.done [#allocation12], 1024
    $region61: #{gcn_global_norm_forward.1} parent=1 // pred_fallthru
      _
    %v125 = vld [vmem:[#allocation2] sm:$0xff]
    %v126 = vld [vmem:[#allocation2 + $0x8] sm:$0xff]
    %v127 = vld [vmem:[#allocation5] sm:$0xff]
    %v128 = vld [vmem:[#allocation5 + $0x8] sm:$0xff]
    %v129 = vld [vmem:[#allocation7] sm:$0xff]
    %v130 = vld [vmem:[#allocation7 + $0x8] sm:$0xff]
    %v131 = vld [vmem:[#allocation10] sm:$0x1]
    %v132 = vperm.slane %v131, 0
    %vm133 = vcmask 130048
    %v135 = vsel %vm133, %v127, 0
    %v138 = vsel %vm133, %v128, 0
    %140 = vmatpush.msra.mxu0 0.0
    %141 = vmatpush.msra.mxu0 0.0
    %142 = vmatpush.msra.mxu0 0.0
    %143 = vmatpush.msra.mxu0 0.0
    %144 = vmatpush.msra.mxu0 0.0
    %145 = vmatpush.msra.mxu0 0.0
    %146 = vmatpush.msra.mxu0 0.0
    %147 = vmatpush.msra.mxu0 0.0
    %148 = vmatpush.msra.mxu0 0.0
    %149 = vmatpush.msra.mxu0 0.0
    %150 = vmatpush.msra.mxu0 0.0
    %151 = vmatpush.msra.mxu0 0.0
    %152 = vmatpush.msra.mxu0 0.0
    %153 = vmatpush.msra.mxu0 0.0
    %154 = vmatpush.msra.mxu0 %v130
    %155 = vmatpush.msra.mxu0 %v129
    %156 = vmatmul.f32.gmra.mxu0 %v135
    %v157 = vpop.f32.mrf.mxu0
    %v158 = vadd.f32 %v132, %v157
    %159 = vmatmul.f32.gmra.mxu0 %v138
    %v160 = vpop.f32.mrf.mxu0
    %v161 = vadd.f32 %v132, %v160
    %162 = vdwg.mxu0
    %vm163 = vcmask 261120
    %v164 = vsel %vm163, %v158, 0.0
    %v165 = vsel %vm163, %v161, 0.0
    %v166 = vadd.f32 %v164, %v165
    %v167 = vrot.slane %v166, 4
    %v168 = vadd.f32 %v166, %v167
    %v169 = vrot.slane %v168, 2
    %v170 = vadd.f32 %v168, %v169
    %v171 = vrot.slane %v170, 1
    %v172 = vadd.f32 %v170, %v171
    %v173 = vld [vmem:[#allocation8] sm:$0xff]
    %v174 = vld [vmem:[#allocation8 + $0x8] sm:$0xff]
    %v175 = vld [vmem:[#allocation8 + $0x10] sm:$0xff]
    %v176 = vld [vmem:[#allocation8 + $0x18] sm:$0xff]
    %s177 = scalar_lea.vmem [#allocation8], 32
    %v178 = vld [vmem:[%s177] sm:$0xff]
    %v179 = vld [vmem:[%s177 + $0x8] sm:$0xff]
    %v180 = vld [vmem:[%s177 + $0x10] sm:$0xff]
    %v181 = vld [vmem:[%s177 + $0x18] sm:$0xff]
    %v182 = vld [vmem:[#allocation10 + $0x1] sm:$0x1]
    %v183 = vld [vmem:[#allocation10 + $0x2] sm:$0x1]
    %v185 = vsel %vm133, %v125, 0
    %v188 = vsel %vm133, %v126, 0
    %190 = vmatpush.msra.mxu0 0.0
    %191 = vmatpush.msra.mxu0 0.0
    %192 = vmatpush.msra.mxu0 0.0
    %193 = vmatpush.msra.mxu0 0.0
    %194 = vmatpush.msra.mxu0 0.0
    %195 = vmatpush.msra.mxu0 0.0
    %196 = vmatpush.msra.mxu0 0.0
    %197 = vmatpush.msra.mxu0 0.0
    %198 = vmatpush.msra.mxu0 0.0
    %199 = vmatpush.msra.mxu0 0.0
    %200 = vmatpush.msra.mxu0 0.0
    %201 = vmatpush.msra.mxu0 0.0
    %202 = vmatpush.msra.mxu0 0.0
    %203 = vmatpush.msra.mxu0 0.0
    %204 = vmatpush.msra.mxu0 %v161
    %205 = vmatpush.msra.mxu0 %v158
    %206 = vmatmul.f32.gmra.mxu0 %v185
    %v207 = vpop.f32.mrf.mxu0
    %v208 = vadd.f32 0.0, %v207
    %209 = vmatmul.f32.gmra.mxu0 %v188
    %v210 = vpop.f32.mrf.mxu0
    %v211 = vadd.f32 0.0, %v210
    %212 = vdwg.mxu0
    %v213 = vperm.slane %v182, 0
    %v215 = vsel %vm163, %v208, 0
    %v218 = vsel %vm163, %v211, 0
    %220 = vmatpush.msra.mxu0 0.0
    %221 = vmatpush.msra.mxu0 0.0
    %222 = vmatpush.msra.mxu0 0.0
    %223 = vmatpush.msra.mxu0 0.0
    %224 = vmatpush.msra.mxu0 0.0
    %225 = vmatpush.msra.mxu0 0.0
    %226 = vmatpush.msra.mxu0 0.0
    %227 = vmatpush.msra.mxu0 0.0
    %228 = vmatpush.msra.mxu0 0.0
    %229 = vmatpush.msra.mxu0 0.0
    %230 = vmatpush.msra.mxu0 0.0
    %231 = vmatpush.msra.mxu0 0.0
    %232 = vmatpush.msra.mxu0 %v176
    %233 = vmatpush.msra.mxu0 %v175
    %234 = vmatpush.msra.mxu0 %v174
    %235 = vmatpush.msra.mxu0 %v173
    %236 = vmatmul.f32.gmra.mxu0 %v215
    %v237 = vpop.f32.mrf.mxu0
    %v238 = vadd.f32 %v213, %v237
    %239 = vmatmul.f32.gmra.mxu0 %v218
    %v240 = vpop.f32.mrf.mxu0
    %v241 = vadd.f32 %v213, %v240
    %242 = vdwg.mxu0
    %v243 = vmax.f32 %v238, 0.0
    %v244 = vmax.f32 %v241, 0.0
    %v245 = vadd.f32 %v158, %v243
    %v246 = vadd.f32 %v161, %v244
    %v247 = vsel %vm163, %v245, 0.0
    %248 = vadd.xlane.f32.xlu0 %v247
    %v249 = vpop.xlane.xlu0 %248
    %v250 = vsel %vm163, %v246, 0.0
    %251 = vadd.xlane.f32.xlu0 %v250
    %v252 = vpop.xlane.xlu0 %251
    %v253 = vrcp.pop 32.0
    %v254 = vmul.f32 32.0, %v253
    %v255 = vsub.f32 1.0, %v254
    %v256 = vmul.f32 %v253, %v255
    %v257 = vadd.f32 %v253, %v256
    %vm258 = vweird.f32 %v253
    %v259 = vsel %vm258, %v253, %v257
    %v260 = vmul.f32 %v249, %v259
    %v261 = vmul.f32 %v252, %v259
    %v262 = vsub.f32 %v245, %v260
    %v263 = vsub.f32 %v246, %v261
    %v264 = vmul.f32 %v262, %v262
    %v265 = vmul.f32 %v263, %v263
    %v266 = vsel %vm163, %v264, 0.0
    %267 = vadd.xlane.f32.xlu0 %v266
    %v268 = vpop.xlane.xlu0 %267
    %v269 = vsel %vm163, %v265, 0.0
    %270 = vadd.xlane.f32.xlu0 %v269
    %v271 = vpop.xlane.xlu0 %270
    %v272 = vmul.f32 %v268, %v259
    %v273 = vmul.f32 %v271, %v259
    %v274 = vadd.f32 %v272, 1e-05
    %v275 = vadd.f32 %v273, 1e-05
    %v276 = vrsqrt.pop %v274
    %v277 = vmul.f32 %v276, %v274
    %v278 = vmul.f32 %v277, %v276
    %v279 = vmul.f32 0.5, %v278
    %v280 = vsub.f32 1.5, %v279
    %v281 = vmul.f32 %v276, %v280
    %vm282 = vweird.f32 %v274
    %vm283 = vweird.f32 %v276
    %vm284 = vmor %vm282, %vm283
    %v285 = vsel %vm284, %v276, %v281
    %v286 = vrsqrt.pop %v275
    %v287 = vmul.f32 %v286, %v275
    %v288 = vmul.f32 %v287, %v286
    %v289 = vmul.f32 0.5, %v288
    %v290 = vsub.f32 1.5, %v289
    %v291 = vmul.f32 %v286, %v290
    %vm292 = vweird.f32 %v275
    %vm293 = vweird.f32 %v286
    %vm294 = vmor %vm292, %vm293
    %v295 = vsel %vm294, %v286, %v291
    %v296 = vmul.f32 %v262, %v285
    %v297 = vmul.f32 %v263, %v295
    %v299 = vsel %vm163, %v296, 0
    %v302 = vsel %vm163, %v297, 0
    %304 = vmatpush.msra.mxu0 0.0
    %305 = vmatpush.msra.mxu0 0.0
    %306 = vmatpush.msra.mxu0 0.0
    %307 = vmatpush.msra.mxu0 0.0
    %308 = vmatpush.msra.mxu0 0.0
    %309 = vmatpush.msra.mxu0 0.0
    %310 = vmatpush.msra.mxu0 0.0
    %311 = vmatpush.msra.mxu0 0.0
    %312 = vmatpush.msra.mxu0 0.0
    %313 = vmatpush.msra.mxu0 0.0
    %314 = vmatpush.msra.mxu0 0.0
    %315 = vmatpush.msra.mxu0 0.0
    %316 = vmatpush.msra.mxu0 %v181
    %317 = vmatpush.msra.mxu0 %v180
    %318 = vmatpush.msra.mxu0 %v179
    %319 = vmatpush.msra.mxu0 %v178
    %320 = vmatmul.f32.gmra.mxu0 %v299
    %v321 = vpop.f32.mrf.mxu0
    %v322 = vadd.f32 0.0, %v321
    %323 = vmatmul.f32.gmra.mxu0 %v302
    %v324 = vpop.f32.mrf.mxu0
    %v325 = vadd.f32 0.0, %v324
    %326 = vdwg.mxu0
    %v327 = vsel %vm163, %v322, 0.0
    %v328 = vsel %vm163, %v325, 0.0
    %v329 = vadd.f32 %v327, %v328
    %v330 = vrot.slane %v329, 4
    %v331 = vadd.f32 %v329, %v330
    %v332 = vrot.slane %v331, 2
    %v333 = vadd.f32 %v331, %v332
    %v334 = vrot.slane %v333, 1
    %v335 = vadd.f32 %v333, %v334
    %v336 = vadd.f32 %v335, %v183
    %vm337 = vcmp.gt.f32.partialorder %v336, 0.0
    %v338 = vmul.f32 %v336, 0.01
    %v339 = vsel %vm337, %v336, %v338
    %v340 = vadd.f32 %v172, %v339
    %s341 = scalar_lea.vmem [#allocation8], 64
    %v342 = vld [vmem:[%s341] sm:$0xff]
    %v343 = vld [vmem:[%s341 + $0x8] sm:$0xff]
    %v344 = vld [vmem:[%s341 + $0x10] sm:$0xff]
    %v345 = vld [vmem:[%s341 + $0x18] sm:$0xff]
    %s346 = scalar_lea.vmem [#allocation8], 96
    %v347 = vld [vmem:[%s346] sm:$0xff]
    %v348 = vld [vmem:[%s346 + $0x8] sm:$0xff]
    %v349 = vld [vmem:[%s346 + $0x10] sm:$0xff]
    %v350 = vld [vmem:[%s346 + $0x18] sm:$0xff]
    %v351 = vld [vmem:[#allocation10 + $0x3] sm:$0x1]
    %v352 = vld [vmem:[#allocation10 + $0x4] sm:$0x1]
    %353 = vmatpush.msra.mxu0 0.0
    %354 = vmatpush.msra.mxu0 0.0
    %355 = vmatpush.msra.mxu0 0.0
    %356 = vmatpush.msra.mxu0 0.0
    %357 = vmatpush.msra.mxu0 0.0
    %358 = vmatpush.msra.mxu0 0.0
    %359 = vmatpush.msra.mxu0 0.0
    %360 = vmatpush.msra.mxu0 0.0
    %361 = vmatpush.msra.mxu0 0.0
    %362 = vmatpush.msra.mxu0 0.0
    %363 = vmatpush.msra.mxu0 0.0
    %364 = vmatpush.msra.mxu0 0.0
    %365 = vmatpush.msra.mxu0 0.0
    %366 = vmatpush.msra.mxu0 0.0
    %367 = vmatpush.msra.mxu0 %v297
    %368 = vmatpush.msra.mxu0 %v296
    %369 = vmatmul.f32.gmra.mxu0 %v185
    %v370 = vpop.f32.mrf.mxu0
    %v371 = vadd.f32 0.0, %v370
    %372 = vmatmul.f32.gmra.mxu0 %v188
    %v373 = vpop.f32.mrf.mxu0
    %v374 = vadd.f32 0.0, %v373
    %375 = vdwg.mxu0
    %v376 = vperm.slane %v351, 0
    %v378 = vsel %vm163, %v371, 0
    %v381 = vsel %vm163, %v374, 0
    %383 = vmatpush.msra.mxu0 0.0
    %384 = vmatpush.msra.mxu0 0.0
    %385 = vmatpush.msra.mxu0 0.0
    %386 = vmatpush.msra.mxu0 0.0
    %387 = vmatpush.msra.mxu0 0.0
    %388 = vmatpush.msra.mxu0 0.0
    %389 = vmatpush.msra.mxu0 0.0
    %390 = vmatpush.msra.mxu0 0.0
    %391 = vmatpush.msra.mxu0 0.0
    %392 = vmatpush.msra.mxu0 0.0
    %393 = vmatpush.msra.mxu0 0.0
    %394 = vmatpush.msra.mxu0 0.0
    %395 = vmatpush.msra.mxu0 %v345
    %396 = vmatpush.msra.mxu0 %v344
    %397 = vmatpush.msra.mxu0 %v343
    %398 = vmatpush.msra.mxu0 %v342
    %399 = vmatmul.f32.gmra.mxu0 %v378
    %v400 = vpop.f32.mrf.mxu0
    %v401 = vadd.f32 %v376, %v400
    %402 = vmatmul.f32.gmra.mxu0 %v381
    %v403 = vpop.f32.mrf.mxu0
    %v404 = vadd.f32 %v376, %v403
    %405 = vdwg.mxu0
    %v406 = vmax.f32 %v401, 0.0
    %v407 = vmax.f32 %v404, 0.0
    %v408 = vadd.f32 %v296, %v406
    %v409 = vadd.f32 %v297, %v407
    %v410 = vsel %vm163, %v408, 0.0
    %411 = vadd.xlane.f32.xlu0 %v410
    %v412 = vpop.xlane.xlu0 %411
    %v413 = vsel %vm163, %v409, 0.0
    %414 = vadd.xlane.f32.xlu0 %v413
    %v415 = vpop.xlane.xlu0 %414
    %v416 = vmul.f32 %v412, %v259
    %v417 = vmul.f32 %v415, %v259
    %v418 = vsub.f32 %v408, %v416
    %v419 = vsub.f32 %v409, %v417
    %v420 = vmul.f32 %v418, %v418
    %v421 = vmul.f32 %v419, %v419
    %v422 = vsel %vm163, %v420, 0.0
    %423 = vadd.xlane.f32.xlu0 %v422
    %v424 = vpop.xlane.xlu0 %423
    %v425 = vsel %vm163, %v421, 0.0
    %426 = vadd.xlane.f32.xlu0 %v425
    %v427 = vpop.xlane.xlu0 %426
    %v428 = vmul.f32 %v424, %v259
    %v429 = vmul.f32 %v427, %v259
    %v430 = vadd.f32 %v428, 1e-05
    %v431 = vadd.f32 %v429, 1e-05
    %v432 = vrsqrt.pop %v430
    %v433 = vmul.f32 %v432, %v430
    %v434 = vmul.f32 %v433, %v432
    %v435 = vmul.f32 0.5, %v434
    %v436 = vsub.f32 1.5, %v435
    %v437 = vmul.f32 %v432, %v436
    %vm438 = vweird.f32 %v430
    %vm439 = vweird.f32 %v432
    %vm440 = vmor %vm438, %vm439
    %v441 = vsel %vm440, %v432, %v437
    %v442 = vrsqrt.pop %v431
    %v443 = vmul.f32 %v442, %v431
    %v444 = vmul.f32 %v443, %v442
    %v445 = vmul.f32 0.5, %v444
    %v446 = vsub.f32 1.5, %v445
    %v447 = vmul.f32 %v442, %v446
    %vm448 = vweird.f32 %v431
    %vm449 = vweird.f32 %v442
    %vm450 = vmor %vm448, %vm449
    %v451 = vsel %vm450, %v442, %v447
    %v452 = vmul.f32 %v418, %v441
    %v453 = vmul.f32 %v419, %v451
    %v455 = vsel %vm163, %v452, 0
    %v458 = vsel %vm163, %v453, 0
    %460 = vmatpush.msra.mxu0 0.0
    %461 = vmatpush.msra.mxu0 0.0
    %462 = vmatpush.msra.mxu0 0.0
    %463 = vmatpush.msra.mxu0 0.0
    %464 = vmatpush.msra.mxu0 0.0
    %465 = vmatpush.msra.mxu0 0.0
    %466 = vmatpush.msra.mxu0 0.0
    %467 = vmatpush.msra.mxu0 0.0
    %468 = vmatpush.msra.mxu0 0.0
    %469 = vmatpush.msra.mxu0 0.0
    %470 = vmatpush.msra.mxu0 0.0
    %471 = vmatpush.msra.mxu0 0.0
    %472 = vmatpush.msra.mxu0 %v350
    %473 = vmatpush.msra.mxu0 %v349
    %474 = vmatpush.msra.mxu0 %v348
    %475 = vmatpush.msra.mxu0 %v347
    %476 = vmatmul.f32.gmra.mxu0 %v455
    %v477 = vpop.f32.mrf.mxu0
    %v478 = vadd.f32 0.0, %v477
    %479 = vmatmul.f32.gmra.mxu0 %v458
    %v480 = vpop.f32.mrf.mxu0
    %v481 = vadd.f32 0.0, %v480
    %482 = vdwg.mxu0
    %v483 = vsel %vm163, %v478, 0.0
    %v484 = vsel %vm163, %v481, 0.0
    %v485 = vadd.f32 %v483, %v484
    %v486 = vrot.slane %v485, 4
    %v487 = vadd.f32 %v485, %v486
    %v488 = vrot.slane %v487, 2
    %v489 = vadd.f32 %v487, %v488
    %v490 = vrot.slane %v489, 1
    %v491 = vadd.f32 %v489, %v490
    %v492 = vadd.f32 %v491, %v352
    %vm493 = vcmp.gt.f32.partialorder %v492, 0.0
    %v494 = vmul.f32 %v492, 0.01
    %v495 = vsel %vm493, %v492, %v494
    %v496 = vadd.f32 %v340, %v495
    %v497 = vld [vmem:[%s5] sm:$0xff]
    %v498 = vld [vmem:[%s5 + $0x8] sm:$0xff]
    %v499 = vld [vmem:[%s5 + $0x10] sm:$0xff]
    %v500 = vld [vmem:[%s5 + $0x18] sm:$0xff]
    %v501 = vld [vmem:[%s7] sm:$0x1]
    %v503 = vsel %vm163, %v496, 0
    %505 = vmatpush.msra.mxu0 0.0
    %506 = vmatpush.msra.mxu0 0.0
    %507 = vmatpush.msra.mxu0 0.0
    %508 = vmatpush.msra.mxu0 0.0
    %509 = vmatpush.msra.mxu0 0.0
    %510 = vmatpush.msra.mxu0 0.0
    %511 = vmatpush.msra.mxu0 0.0
    %512 = vmatpush.msra.mxu0 0.0
    %513 = vmatpush.msra.mxu0 0.0
    %514 = vmatpush.msra.mxu0 0.0
    %515 = vmatpush.msra.mxu0 0.0
    %516 = vmatpush.msra.mxu0 0.0
    %517 = vmatpush.msra.mxu0 %v500
    %518 = vmatpush.msra.mxu0 %v499
    %519 = vmatpush.msra.mxu0 %v498
    %520 = vmatpush.msra.mxu0 %v497
    %521 = vmatmul.f32.gmra.mxu0 %v503
    %v522 = vpop.f32.mrf.mxu0
    %v523 = vadd.f32 %v501, %v522
    %524 = vdwg.mxu0
    %v525 = vmax.f32 %v523, 0.0
    %v526 = vld [vmem:[#allocation11] sm:$0xff]
    %v527 = vld [vmem:[#allocation11 + $0x8] sm:$0xff]
    %v528 = vld [vmem:[#allocation11 + $0x10] sm:$0xff]
    %v529 = vld [vmem:[#allocation11 + $0x18] sm:$0xff]
    %v530 = vperm.slane %v525, 0
    %v531 = vmul.f32 %v526, %v530
    %v532 = vmul.f32 %v527, %v530
    %v533 = vmul.f32 %v528, %v530
    %v534 = vmul.f32 %v529, %v530
    %v535 = vsel %vm163, %v531, 0.0
    %536 = vadd.xlane.f32.xlu0 %v535
    %v537 = vpop.xlane.xlu0 %536
    %v538 = vsel %vm163, %v532, 0.0
    %539 = vadd.xlane.f32.xlu0 %v538
    %v540 = vpop.xlane.xlu0 %539
    %v541 = vsel %vm163, %v533, 0.0
    %542 = vadd.xlane.f32.xlu0 %v541
    %v543 = vpop.xlane.xlu0 %542
    %v544 = vsel %vm163, %v534, 0.0
    %545 = vadd.xlane.f32.xlu0 %v544
    %v546 = vpop.xlane.xlu0 %545
    %v547 = vld [vmem:[%s8] sm:$0xff]
    %v548 = vld [vmem:[%s8 + $0x8] sm:$0xff]
    %v549 = vld [vmem:[%s8 + $0x10] sm:$0xff]
    %v550 = vld [vmem:[%s8 + $0x18] sm:$0xff]
    %v551 = vadd.f32 %v537, %v547
    %v552 = vadd.f32 %v540, %v548
    %v553 = vadd.f32 %v543, %v549
    %v554 = vadd.f32 %v546, %v550
    %v555 = vmax.f32 %v551, 0.0
    %v556 = vmax.f32 %v552, 0.0
    %v557 = vmax.f32 %v553, 0.0
    %v558 = vmax.f32 %v554, 0.0
    %s559 = scalar_lea.vmem [#allocation11], 32
    %v560 = vld [vmem:[%s559] sm:$0xff]
    %v561 = vld [vmem:[%s559 + $0x8] sm:$0xff]
    %v562 = vld [vmem:[%s559 + $0x10] sm:$0xff]
    %v563 = vld [vmem:[%s559 + $0x18] sm:$0xff]
    %565 = vset.pattern.permute.xlu0 0
    %566 = vperm.xlu0 %565, %v555
    %v567 = vpop.permute.xlu0 %566
    %570 = vset.pattern.permute.xlu0 0
    %571 = vperm.xlu0 %570, %v556
    %v572 = vpop.permute.xlu0 %571
    %575 = vset.pattern.permute.xlu0 0
    %576 = vperm.xlu0 %575, %v557
    %v577 = vpop.permute.xlu0 %576
    %580 = vset.pattern.permute.xlu0 0
    %581 = vperm.xlu0 %580, %v558
    %v582 = vpop.permute.xlu0 %581
    %v584 = vmul.f32 %v560, %v567
    %v585 = vmul.f32 %v561, %v572
    %v586 = vmul.f32 %v562, %v577
    %v587 = vmul.f32 %v563, %v582
    %v588 = vsel %vm163, %v584, 0.0
    %v589 = vsel %vm163, %v585, 0.0
    %v590 = vadd.f32 %v588, %v589
    %v591 = vsel %vm163, %v586, 0.0
    %v592 = vadd.f32 %v590, %v591
    %v593 = vsel %vm163, %v587, 0.0
    %v594 = vadd.f32 %v592, %v593
    %v595 = vrot.slane %v594, 4
    %v596 = vadd.f32 %v594, %v595
    %v597 = vrot.slane %v596, 2
    %v598 = vadd.f32 %v596, %v597
    %v599 = vrot.slane %v598, 1
    %v600 = vadd.f32 %v598, %v599
    %v601 = vld [vmem:[%s7 + $0x1] sm:$0x1]
    %v602 = vadd.f32 %v600, %v601
    %vm603 = vcmask 253952
    %604 = vst.msk [vmem:[#allocation13] sm:$0x1] %vm603, %v602
    // Predicated region
    $region62: #{gcn_global_norm_forward.1} parent=1 // pred_check
      _
    $region63: #{gcn_global_norm_forward.1} parent=1 // pred_check_branch
      %606 = sbr.rel (0) target = $region65
    $region64: #{gcn_global_norm_forward.1} parent=1 // pred_region
      %608 = vsyncadd [#allocation4], 0
      %s610 = sshll.u32 [#allocation13], 4
      %s611 = int_to_ptr.vmem [resolvable:$true] %s610
      %s612 = sshll.u32 %s9, 4
      %s613 = int_to_ptr.hbm [resolvable:$true] %s612
      %615 = dma.vmem_to_hbm [thread:$0]  %s611, 16, %s613, [#allocation4]
    $region65: #{gcn_global_norm_forward.1} parent=1 // pred_fallthru
      _
    // Predicated region
    $region66: #{gcn_global_norm_forward.1} parent=1 // pred_check
      _
    $region67: #{gcn_global_norm_forward.1} parent=1 // pred_check_branch
      %617 = sbr.rel (0) target = $region69
    $region68: #{gcn_global_norm_forward.1} parent=1 // pred_region
      %619 = dma.done [#allocation4], 16
    $region69: #{gcn_global_norm_forward.1} parent=1 // pred_fallthru
      _
    %620 = vsyncpa [#allocation3], 1
    %621 = vsyncpa [#allocation6], 1
    %622 = vsyncpa [#allocation9], 1
    %623 = vsyncpa [#allocation12], 1
    %624 = vsyncpa [#allocation4], 1

</llo_original>
